<compile_context>
chip_gen: v5e
topology: v5e:2x2
jax: 0.10.0
libtpu: 0.0.40
codegen_flags: <defaults>
</compile_context>

<pallas_src>
import functools

import jax
import jax.numpy as jnp
from jax.experimental import pallas as pl
from jax.experimental.pallas import tpu as pltpu

_LANE = 128


def _round_up(v, m):
    return (v + m - 1) // m * m


def _vmem_budget_bytes():
    """Generation-aware VMEM budget: 80% of physical capacity (headroom for
    compiler-internal scratch).  Falls back to the smallest per-TC capacity
    across generations (v7x: 64 MiB) if the query is unavailable."""
    try:
        cap = pltpu.get_tpu_info().vmem_capacity_bytes
    except Exception:
        cap = 64 * 1024 * 1024
    return int(cap * 0.8)


def _pick_tile(n, d_pad, x_bytes, w_bytes, a_bytes, budget):
    """Largest lane-aligned divisor of d_pad whose working set fits the budget."""
    cands = []
    for c in (d_pad, 4096, 2048, 1024, 512, 384, 256, 128):
        if c <= d_pad and d_pad % c == 0 and c not in cands:
            cands.append(c)
    n_pad = _round_up(n, 8)
    fixed = (2 * n_pad * d_pad * x_bytes      # x block (conservatively double-buffered)
             + n_pad * d_pad * a_bytes        # post-BN activation scratch
             + 3 * n_pad * _LANE * 4          # (N,1) loss partials, lane-padded
             + (1 << 20))                     # slack: semaphores / small blocks
    for t in cands:
        need = (fixed
                + 2 * d_pad * t * w_bytes * 2  # w1t + w2t slabs, double-buffered
                + 2 * n_pad * t * 4            # y block (f32), double-buffered
                + 2 * 3 * 8 * t * 4)           # b2 / gamma / beta blocks
        if need <= budget:
            return t
    return cands[-1]


def _autoencoder_loss_kernel(
    x_ref, y_ref, w1t_ref, w2t_ref, b2_ref, gamma_ref, beta_ref,   # inputs
    out_ref,                                                       # (1,1) f32 output
    a_buf, r0, r1, r2,                                             # VMEM scratch
    *, loss, n_h, n_j, th, n_real, d_real):
    t = pl.program_id(0)
    last_t = n_h + n_j - 1
    f32 = jnp.float32

    @pl.when(t == 0)
    def _init():
        r0[...] = jnp.zeros_like(r0)
        r1[...] = jnp.zeros_like(r1)
        r2[...] = jnp.zeros_like(r2)

    # ---- Phase 1 (steps 0..n_h-1): column-tiled Linear1 + BatchNorm1d + ReLU.
    # b1 is intentionally omitted: training-mode BN subtracts the per-column
    # batch mean, which cancels any per-feature pre-BN bias exactly.
    @pl.when(t < n_h)
    def _linear1_bn_relu():
        h = jnp.dot(x_ref[...], w1t_ref[...], preferred_element_type=f32)  # (N, th)
        mean = jnp.mean(h, axis=0, keepdims=True)                          # (1, th)
        cent = h - mean
        var = jnp.mean(cent * cent, axis=0, keepdims=True)                 # two-pass var
        scale = gamma_ref[...] * jax.lax.rsqrt(var + 1e-5)                 # gamma folded
        a = jnp.maximum(cent * scale + beta_ref[...], 0.0)
        a_buf[t] = a.astype(a_buf.dtype)

    # ---- Phase 2 (steps n_h..): output-tiled Linear2 + per-row loss partials.
    @pl.when(t >= n_h)
    def _linear2_loss():
        y_hat = jnp.dot(a_buf[0], w2t_ref[:th, :], preferred_element_type=f32)
        for i in range(1, n_h):  # static unroll over hidden slabs (K accumulation)
            y_hat += jnp.dot(a_buf[i], w2t_ref[i * th:(i + 1) * th, :],
                             preferred_element_type=f32)
        y_hat = y_hat + b2_ref[...]
        yt = y_ref[...]
        if loss == "l1":
            r0[...] += jnp.sum(jnp.abs(y_hat - yt), axis=1, keepdims=True)
        elif loss == "l2":
            d = y_hat - yt
            r0[...] += jnp.sum(d * d, axis=1, keepdims=True)
        else:  # cosine
            r0[...] += jnp.sum(y_hat * yt, axis=1, keepdims=True)
            r1[...] += jnp.sum(y_hat * y_hat, axis=1, keepdims=True)
            r2[...] += jnp.sum(yt * yt, axis=1, keepdims=True)

    # ---- Finalize scalar loss on the last grid step.
    @pl.when(t == last_t)
    def _finalize():
        if loss in ("l1", "l2"):
            total = jnp.sum(r0[...]) * (1.0 / (n_real * d_real))
        else:
            # F.normalize clamps each L2 norm to 1e-12 before dividing.
            pn = jnp.maximum(jnp.sqrt(r1[...]), 1e-12)
            zn = jnp.maximum(jnp.sqrt(r2[...]), 1e-12)
            total = jnp.sum(-r0[...] / (pn * zn)) * (1.0 / n_real)
        out_ref[...] = jnp.reshape(total, (1, 1))


def prepare_params(params, *, use_bf16_matmul=True):
    """One-time parameter prep (do this outside the step function):
    transpose Linear weights to (in, out), cast them for the MXU, zero-pad the
    feature axis to a lane multiple, reshape per-feature vectors to (1, D)."""
    w1, b1, w2, b2, gamma, beta = params
    del b1  # exactly cancelled by training-mode BatchNorm's mean subtraction
    d = w1.shape[0]
    d_pad = _round_up(d, _LANE)
    wdtype = jnp.bfloat16 if use_bf16_matmul else jnp.float32
    pad2 = ((0, d_pad - d), (0, d_pad - d))
    pad1 = ((0, 0), (0, d_pad - d))
    return dict(
        w1t=jnp.pad(jnp.transpose(w1).astype(wdtype), pad2),
        w2t=jnp.pad(jnp.transpose(w2).astype(wdtype), pad2),
        b2=jnp.pad(b2.reshape(1, d).astype(jnp.float32), pad1),
        gamma=jnp.pad(gamma.reshape(1, d).astype(jnp.float32), pad1),
        beta=jnp.pad(beta.reshape(1, d).astype(jnp.float32), pad1),
        d_real=d, d_pad=d_pad, matmul_dtype=wdtype,
    )


def autoencoder_forward(x, y, prep, *, loss="l2", vmem_budget_bytes=None):
    """AutoEncoder forward pass; returns the scalar reconstruction loss."""
    if loss not in ("l1", "l2", "cosine"):
        raise ValueError(f"unsupported loss: {loss}")
    assert x.shape == y.shape
    n, d = x.shape
    d_real, d_pad = prep["d_real"], prep["d_pad"]
    assert d == d_real
    mdt = prep["matmul_dtype"]
    if d_pad != d:  # zero-padded features contribute exactly 0 to every loss term
        x = jnp.pad(x, ((0, 0), (0, d_pad - d)))
        y = jnp.pad(y, ((0, 0), (0, d_pad - d)))
    x = x.astype(mdt)            # pre-cast MXU operand once, outside the kernel
    y = y.astype(jnp.float32)    # loss math stays f32

    budget = vmem_budget_bytes if vmem_budget_bytes is not None else _vmem_budget_bytes()
    ib = jnp.dtype(mdt).itemsize
    tile = _pick_tile(n, d_pad, ib, ib, ib, budget)
    th = tj = tile
    n_h, n_j = d_pad // th, d_pad // tj

    kernel = functools.partial(
        _autoencoder_loss_kernel, loss=loss, n_h=n_h, n_j=n_j, th=th,
        n_real=n, d_real=d_real)

    in_specs = [
        pl.BlockSpec((n, d_pad), lambda t: (0, 0)),                          # x (resident)
        pl.BlockSpec((n, tj), lambda t: (0, jnp.maximum(t - n_h, 0))),       # y (j tiles)
        pl.BlockSpec((d_pad, th), lambda t: (0, jnp.minimum(t, n_h - 1))),   # w1^T slabs
        pl.BlockSpec((d_pad, tj), lambda t: (0, jnp.maximum(t - n_h, 0))),   # w2^T slabs
        pl.BlockSpec((1, tj), lambda t: (0, jnp.maximum(t - n_h, 0))),       # b2 (j tiles)
        pl.BlockSpec((1, th), lambda t: (0, jnp.minimum(t, n_h - 1))),       # gamma
        pl.BlockSpec((1, th), lambda t: (0, jnp.minimum(t, n_h - 1))),       # beta
    ]
    out_spec = pl.BlockSpec((1, 1), lambda t: (0, 0))
    scratch_shapes = [
        pltpu.VMEM((n_h, n, th), mdt),      # post-BN/ReLU activation slabs (MXU operand)
        pltpu.VMEM((n, 1), jnp.float32),    # per-row loss sum / <y_hat, y>
        pltpu.VMEM((n, 1), jnp.float32),    # per-row ||y_hat||^2 (cosine)
        pltpu.VMEM((n, 1), jnp.float32),    # per-row ||y||^2 (cosine)
    ]

    out = pl.pallas_call(
        kernel,
        out_shape=jax.ShapeDtypeStruct((1, 1), jnp.float32),
        grid_spec=pltpu.PrefetchScalarGridSpec(
            num_scalar_prefetch=0,
            grid=(n_h + n_j,),
            in_specs=in_specs,
            out_specs=out_spec,
            scratch_shapes=scratch_shapes,
        ),
        compiler_params=pltpu.CompilerParams(
            dimension_semantics=("arbitrary",),
            vmem_limit_bytes=budget,
        ),
    )(x, y, prep["w1t"], prep["w2t"], prep["b2"], prep["gamma"], prep["beta"])
    return out[0, 0]


def init_params(key, emb_dim):
    """Deterministic synthetic init mimicking PyTorch Linear default ranges
    (PyTorch layout: W is (out, in))."""
    k1, k2, k3, k4 = jax.random.split(key, 4)
    bound = 1.0 / jnp.sqrt(emb_dim)
    w1 = jax.random.uniform(k1, (emb_dim, emb_dim), jnp.float32, -bound, bound)
    b1 = jax.random.uniform(k2, (emb_dim,), jnp.float32, -bound, bound)
    w2 = jax.random.uniform(k3, (emb_dim, emb_dim), jnp.float32, -bound, bound)
    b2 = jax.random.uniform(k4, (emb_dim,), jnp.float32, -bound, bound)
    gamma = jnp.ones((emb_dim,), jnp.float32)   # BatchNorm1d default affine
    beta = jnp.zeros((emb_dim,), jnp.float32)
    return (w1, b1, w2, b2, gamma, beta)


def _reference(x, y, params, loss):
    """Pure-JAX f32 reference (full PyTorch semantics, b1 included)."""
    w1, b1, w2, b2, gamma, beta = params
    h = x @ w1.T + b1
    mean = h.mean(0, keepdims=True)
    var = ((h - mean) ** 2).mean(0, keepdims=True)
    h = (h - mean) / jnp.sqrt(var + 1e-5) * gamma + beta
    a = jnp.maximum(h, 0.0)
    y_hat = a @ w2.T + b2
    if loss == "l1":
        return jnp.mean(jnp.abs(y_hat - y))
    if loss == "l2":
        return jnp.mean((y_hat - y) ** 2)
    p = y_hat / jnp.maximum(jnp.linalg.norm(y_hat, axis=1, keepdims=True), 1e-12)
    z = y / jnp.maximum(jnp.linalg.norm(y, axis=1, keepdims=True), 1e-12)
    return jnp.mean(-(p * z).sum(1))


if __name__ == "__main__":
    key = jax.random.PRNGKey(0)
    kx, ky, kp = jax.random.split(key, 3)

    batch, emb_dim = 16, 128          # small, lane/MXU-aligned demo shapes
    x = jax.random.normal(kx, (batch, emb_dim), jnp.float32)
    y = jax.random.normal(ky, (batch, emb_dim), jnp.float32)
    params = init_params(kp, emb_dim)

    prep_f32 = prepare_params(params, use_bf16_matmul=False)   # tight-tolerance check
    prep_bf16 = prepare_params(params, use_bf16_matmul=True)   # fast bf16-MXU path

    ok = True
    for loss_name in ("l2", "l1", "cosine"):
        ref = _reference(x, y, params, loss_name)
        out_f32 = jax.block_until_ready(
            autoencoder_forward(x, y, prep_f32, loss=loss_name))
        out_bf16 = jax.block_until_ready(
            autoencoder_forward(x, y, prep_bf16, loss=loss_name))
        if not jnp.allclose(out_f32, ref, atol=1e-4, rtol=1e-4):
            ok = False
            print(f"MISMATCH (f32) loss={loss_name}: kernel={out_f32} ref={ref}")
        if not jnp.allclose(out_bf16, ref, atol=5e-2, rtol=5e-2):
            ok = False
            print(f"MISMATCH (bf16) loss={loss_name}: kernel={out_bf16} ref={ref}")

    if ok:
        print("KERNEL_OK")
</pallas_src>

<mosaic_0001>
module attributes {stable_mosaic.version = 11 : i64} {
  func.func @_autoencoder_loss_kernel(%arg0: i32, %arg1: memref<16x128xf32, #tpu.memory_space<vmem>>, %arg2: memref<16x128xf32, #tpu.memory_space<vmem>>, %arg3: memref<128x128xf32, #tpu.memory_space<vmem>>, %arg4: memref<128x128xf32, #tpu.memory_space<vmem>>, %arg5: memref<1x128xf32, #tpu.memory_space<vmem>>, %arg6: memref<1x128xf32, #tpu.memory_space<vmem>>, %arg7: memref<1x128xf32, #tpu.memory_space<vmem>>, %arg8: memref<1x1xf32, #tpu.memory_space<vmem>>, %arg9: memref<1x16x128xf32, #tpu.memory_space<vmem>>, %arg10: memref<16x1xf32, #tpu.memory_space<vmem>>, %arg11: memref<16x1xf32, #tpu.memory_space<vmem>>, %arg12: memref<16x1xf32, #tpu.memory_space<vmem>>) attributes {dimension_semantics = [#tpu.dimension_semantics<arbitrary>], iteration_bounds = array<i64: 2>, scalar_prefetch = 0 : i64, scratch_operands = 4 : i64, tpu.core_type = #tpu.core_type<tc>, window_params = [{pipeline_mode = #tpu.pipeline_mode<synchronous>, transform_indices = @transform_0, window_bounds = array<i64: 16, 128>}, {transform_indices = @transform_1, window_bounds = array<i64: 16, 128>}, {transform_indices = @transform_2, window_bounds = array<i64: 128, 128>}, {transform_indices = @transform_3, window_bounds = array<i64: 128, 128>}, {transform_indices = @transform_4, window_bounds = array<i64: 1, 128>}, {transform_indices = @transform_5, window_bounds = array<i64: 1, 128>}, {transform_indices = @transform_6, window_bounds = array<i64: 1, 128>}, {pipeline_mode = #tpu.pipeline_mode<synchronous>, transform_indices = @transform_7, window_bounds = array<i64: 1, 1>}]} {
    %c0_i32 = arith.constant 0 : i32
    %0 = arith.cmpi eq, %arg0, %c0_i32 : i32
    %1 = arith.extui %0 : i1 to i32
    %c0_i32_0 = arith.constant 0 : i32
    %2 = arith.cmpi ne, %1, %c0_i32_0 : i32
    scf.if %2 {
      %cst = arith.constant 0.000000e+00 : f32
      %12 = vector.broadcast %cst : f32 to vector<16x1xf32>
      %c0 = arith.constant 0 : index
      %c0_6 = arith.constant 0 : index
      %13 = vector.load %arg10[%c0, %c0_6] : memref<16x1xf32, #tpu.memory_space<vmem>>, vector<16x1xf32>
      tpu.vector_store %arg10[%c0, %c0_6], %12 {strides = array<i32>} : memref<16x1xf32, #tpu.memory_space<vmem>>, vector<16x1xf32>,
      %cst_7 = arith.constant 0.000000e+00 : f32
      %14 = vector.broadcast %cst_7 : f32 to vector<16x1xf32>
      %c0_8 = arith.constant 0 : index
      %c0_9 = arith.constant 0 : index
      %15 = vector.load %arg11[%c0_8, %c0_9] : memref<16x1xf32, #tpu.memory_space<vmem>>, vector<16x1xf32>
      tpu.vector_store %arg11[%c0_8, %c0_9], %14 {strides = array<i32>} : memref<16x1xf32, #tpu.memory_space<vmem>>, vector<16x1xf32>,
      %cst_10 = arith.constant 0.000000e+00 : f32
      %16 = vector.broadcast %cst_10 : f32 to vector<16x1xf32>
      %c0_11 = arith.constant 0 : index
      %c0_12 = arith.constant 0 : index
      %17 = vector.load %arg12[%c0_11, %c0_12] : memref<16x1xf32, #tpu.memory_space<vmem>>, vector<16x1xf32>
      tpu.vector_store %arg12[%c0_11, %c0_12], %16 {strides = array<i32>} : memref<16x1xf32, #tpu.memory_space<vmem>>, vector<16x1xf32>,
    } else {
    }
    %c1_i32 = arith.constant 1 : i32
    %3 = arith.cmpi slt, %arg0, %c1_i32 : i32
    %4 = arith.extui %3 : i1 to i32
    %c0_i32_1 = arith.constant 0 : i32
    %5 = arith.cmpi ne, %4, %c0_i32_1 : i32
    scf.if %5 {
      %c0 = arith.constant 0 : index
      %c0_6 = arith.constant 0 : index
      %12 = vector.load %arg1[%c0, %c0_6] : memref<16x128xf32, #tpu.memory_space<vmem>>, vector<16x128xf32>
      %c0_7 = arith.constant 0 : index
      %c0_8 = arith.constant 0 : index
      %13 = vector.load %arg3[%c0_7, %c0_8] : memref<128x128xf32, #tpu.memory_space<vmem>>, vector<128x128xf32>
      %cst = arith.constant dense<0.000000e+00> : vector<16x128xf32>
      %14 = tpu.matmul %12, %13, %cst {dimension_numbers = #tpu.dot_dimension_numbers<[1], [0], [0], [1], [0, 0, 1, 1], [], []>} : vector<16x128xf32>, vector<128x128xf32>, vector<16x128xf32> -> vector<16x128xf32>
      %cst_9 = arith.constant dense<0.000000e+00> : vector<128xf32>
      %15 = vector.multi_reduction <add>, %14, %cst_9 [0] : vector<16x128xf32> to vector<128xf32>
      %16 = vector.shape_cast %15 : vector<128xf32> to vector<1x128xf32>
      %cst_10 = arith.constant 1.600000e+01 : f32
      %17 = vector.broadcast %cst_10 : f32 to vector<1x128xf32>
      %18 = arith.divf %16, %17 : vector<1x128xf32>
      %19 = vector.broadcast %18 : vector<1x128xf32> to vector<16x128xf32>
      %20 = arith.subf %14, %19 : vector<16x128xf32>
      %21 = arith.mulf %20, %20 : vector<16x128xf32>
      %cst_11 = arith.constant dense<0.000000e+00> : vector<128xf32>
      %22 = vector.multi_reduction <add>, %21, %cst_11 [0] : vector<16x128xf32> to vector<128xf32>
      %23 = vector.shape_cast %22 : vector<128xf32> to vector<1x128xf32>
      %cst_12 = arith.constant 1.600000e+01 : f32
      %24 = vector.broadcast %cst_12 : f32 to vector<1x128xf32>
      %25 = arith.divf %23, %24 : vector<1x128xf32>
      %c0_13 = arith.constant 0 : index
      %c0_14 = arith.constant 0 : index
      %26 = vector.load %arg6[%c0_13, %c0_14] : memref<1x128xf32, #tpu.memory_space<vmem>>, vector<1x128xf32>
      %cst_15 = arith.constant 9.99999974E-6 : f32
      %27 = vector.broadcast %cst_15 : f32 to vector<1x128xf32>
      %28 = arith.addf %25, %27 : vector<1x128xf32>
      %29 = math.rsqrt %28 : vector<1x128xf32>
      %30 = arith.mulf %26, %29 : vector<1x128xf32>
      %31 = vector.broadcast %30 : vector<1x128xf32> to vector<16x128xf32>
      %32 = arith.mulf %20, %31 : vector<16x128xf32>
      %c0_16 = arith.constant 0 : index
      %c0_17 = arith.constant 0 : index
      %33 = vector.load %arg7[%c0_16, %c0_17] : memref<1x128xf32, #tpu.memory_space<vmem>>, vector<1x128xf32>
      %34 = vector.broadcast %33 : vector<1x128xf32> to vector<16x128xf32>
      %35 = arith.addf %32, %34 : vector<16x128xf32>
      %cst_18 = arith.constant 0.000000e+00 : f32
      %36 = vector.broadcast %cst_18 : f32 to vector<16x128xf32>
      %37 = arith.maximumf %35, %36 : vector<16x128xf32>
      %38 = arith.index_cast %arg0 : i32 to index
      %c0_19 = arith.constant 0 : index
      %c0_20 = arith.constant 0 : index
      %39 = vector.load %arg9[%38, %c0_19, %c0_20] : memref<1x16x128xf32, #tpu.memory_space<vmem>>, vector<1x16x128xf32>
      %40 = vector.shape_cast %39 : vector<1x16x128xf32> to vector<16x128xf32>
      %41 = vector.shape_cast %37 : vector<16x128xf32> to vector<1x16x128xf32>
      tpu.vector_store %arg9[%38, %c0_19, %c0_20], %41 {strides = array<i32>} : memref<1x16x128xf32, #tpu.memory_space<vmem>>, vector<1x16x128xf32>,
    } else {
    }
    %c1_i32_2 = arith.constant 1 : i32
    %6 = arith.cmpi sge, %arg0, %c1_i32_2 : i32
    %7 = arith.extui %6 : i1 to i32
    %c0_i32_3 = arith.constant 0 : i32
    %8 = arith.cmpi ne, %7, %c0_i32_3 : i32
    scf.if %8 {
      %c0 = arith.constant 0 : index
      %c0_6 = arith.constant 0 : index
      %c0_7 = arith.constant 0 : index
      %12 = vector.load %arg9[%c0, %c0_6, %c0_7] : memref<1x16x128xf32, #tpu.memory_space<vmem>>, vector<1x16x128xf32>
      %13 = vector.shape_cast %12 : vector<1x16x128xf32> to vector<16x128xf32>
      %c0_8 = arith.constant 0 : index
      %c0_9 = arith.constant 0 : index
      %14 = vector.load %arg4[%c0_8, %c0_9] : memref<128x128xf32, #tpu.memory_space<vmem>>, vector<128x128xf32>
      %cst = arith.constant dense<0.000000e+00> : vector<16x128xf32>
      %15 = tpu.matmul %13, %14, %cst {dimension_numbers = #tpu.dot_dimension_numbers<[1], [0], [0], [1], [0, 0, 1, 1], [], []>} : vector<16x128xf32>, vector<128x128xf32>, vector<16x128xf32> -> vector<16x128xf32>
      %c0_10 = arith.constant 0 : index
      %c0_11 = arith.constant 0 : index
      %16 = vector.load %arg5[%c0_10, %c0_11] : memref<1x128xf32, #tpu.memory_space<vmem>>, vector<1x128xf32>
      %17 = vector.broadcast %16 : vector<1x128xf32> to vector<16x128xf32>
      %18 = arith.addf %15, %17 : vector<16x128xf32>
      %c0_12 = arith.constant 0 : index
      %c0_13 = arith.constant 0 : index
      %19 = vector.load %arg2[%c0_12, %c0_13] : memref<16x128xf32, #tpu.memory_space<vmem>>, vector<16x128xf32>
      %20 = arith.subf %18, %19 : vector<16x128xf32>
      %c0_14 = arith.constant 0 : index
      %c0_15 = arith.constant 0 : index
      %21 = vector.load %arg10[%c0_14, %c0_15] : memref<16x1xf32, #tpu.memory_space<vmem>>, vector<16x1xf32>
      %22 = arith.mulf %20, %20 : vector<16x128xf32>
      %cst_16 = arith.constant dense<0.000000e+00> : vector<16xf32>
      %23 = vector.multi_reduction <add>, %22, %cst_16 [1] : vector<16x128xf32> to vector<16xf32>
      %24 = vector.shape_cast %23 : vector<16xf32> to vector<16x1xf32>
      %25 = arith.addf %21, %24 : vector<16x1xf32>
      %c0_17 = arith.constant 0 : index
      %c0_18 = arith.constant 0 : index
      %26 = vector.load %arg10[%c0_17, %c0_18] : memref<16x1xf32, #tpu.memory_space<vmem>>, vector<16x1xf32>
      tpu.vector_store %arg10[%c0_17, %c0_18], %25 {strides = array<i32>} : memref<16x1xf32, #tpu.memory_space<vmem>>, vector<16x1xf32>,
    } else {
    }
    %c1_i32_4 = arith.constant 1 : i32
    %9 = arith.cmpi eq, %arg0, %c1_i32_4 : i32
    %10 = arith.extui %9 : i1 to i32
    %c0_i32_5 = arith.constant 0 : i32
    %11 = arith.cmpi ne, %10, %c0_i32_5 : i32
    scf.if %11 {
      %c0 = arith.constant 0 : index
      %c0_6 = arith.constant 0 : index
      %12 = vector.load %arg10[%c0, %c0_6] : memref<16x1xf32, #tpu.memory_space<vmem>>, vector<16x1xf32>
      %13 = vector.shape_cast %12 : vector<16x1xf32> to vector<1x16x1xf32>
      %cst = arith.constant dense<0.000000e+00> : vector<1xf32>
      %14 = vector.multi_reduction <add>, %13, %cst [1, 2] : vector<1x16x1xf32> to vector<1xf32>
      %15 = vector.shape_cast %14 : vector<1xf32> to vector<1x1x1xf32>
      %16 = vector.extract %15[0, 0, 0] : f32 from vector<1x1x1xf32>
      %cst_7 = arith.constant 4.8828125E-4 : f32
      %17 = arith.mulf %16, %cst_7 : f32
      %18 = vector.broadcast %17 : f32 to vector<1x1xf32>
      %c0_8 = arith.constant 0 : index
      %c0_9 = arith.constant 0 : index
      %19 = vector.load %arg8[%c0_8, %c0_9] : memref<1x1xf32, #tpu.memory_space<vmem>>, vector<1x1xf32>
      tpu.vector_store %arg8[%c0_8, %c0_9], %18 {strides = array<i32>} : memref<1x1xf32, #tpu.memory_space<vmem>>, vector<1x1xf32>,
    } else {
    }
    return
  }
  func.func @transform_0(%arg0: i32) -> (i32, i32) {
    %c0_i32 = arith.constant 0 : i32
    %c0_i32_0 = arith.constant 0 : i32
    %c0_i32_1 = arith.constant 0 : i32
    return %c0_i32, %c0_i32_0 : i32, i32
  }
  func.func @transform_1(%arg0: i32) -> (i32, i32) {
    %c1_i32 = arith.constant 1 : i32
    %0 = arith.subi %arg0, %c1_i32 : i32
    %c0_i32 = arith.constant 0 : i32
    %1 = arith.maxsi %0, %c0_i32 : i32
    %c0_i32_0 = arith.constant 0 : i32
    %c0_i32_1 = arith.constant 0 : i32
    return %c0_i32_0, %1 : i32, i32
  }
  func.func @transform_2(%arg0: i32) -> (i32, i32) {
    %c0_i32 = arith.constant 0 : i32
    %0 = arith.minsi %arg0, %c0_i32 : i32
    %c0_i32_0 = arith.constant 0 : i32
    %c0_i32_1 = arith.constant 0 : i32
    return %c0_i32_0, %0 : i32, i32
  }
  func.func @transform_3(%arg0: i32) -> (i32, i32) {
    %c1_i32 = arith.constant 1 : i32
    %0 = arith.subi %arg0, %c1_i32 : i32
    %c0_i32 = arith.constant 0 : i32
    %1 = arith.maxsi %0, %c0_i32 : i32
    %c0_i32_0 = arith.constant 0 : i32
    %c0_i32_1 = arith.constant 0 : i32
    return %c0_i32_0, %1 : i32, i32
  }
  func.func @transform_4(%arg0: i32) -> (i32, i32) {
    %c1_i32 = arith.constant 1 : i32
    %0 = arith.subi %arg0, %c1_i32 : i32
    %c0_i32 = arith.constant 0 : i32
    %1 = arith.maxsi %0, %c0_i32 : i32
    %c0_i32_0 = arith.constant 0 : i32
    %c0_i32_1 = arith.constant 0 : i32
    return %c0_i32_0, %1 : i32, i32
  }
  func.func @transform_5(%arg0: i32) -> (i32, i32) {
    %c0_i32 = arith.constant 0 : i32
    %0 = arith.minsi %arg0, %c0_i32 : i32
    %c0_i32_0 = arith.constant 0 : i32
    %c0_i32_1 = arith.constant 0 : i32
    return %c0_i32_0, %0 : i32, i32
  }
  func.func @transform_6(%arg0: i32) -> (i32, i32) {
    %c0_i32 = arith.constant 0 : i32
    %0 = arith.minsi %arg0, %c0_i32 : i32
    %c0_i32_0 = arith.constant 0 : i32
    %c0_i32_1 = arith.constant 0 : i32
    return %c0_i32_0, %0 : i32, i32
  }
  func.func @transform_7(%arg0: i32) -> (i32, i32) {
    %c0_i32 = arith.constant 0 : i32
    %c0_i32_0 = arith.constant 0 : i32
    %c0_i32_1 = arith.constant 0 : i32
    return %c0_i32, %c0_i32_0 : i32, i32
  }
}

</mosaic_0001>

<llo_original>
// kernel: tpu_custom_call.1
$region0: #{tpu_custom_call.1}
  #allocation0 [shape = 'u32[]', space=smem, size = 0x4, offset = 0x4, fixed_abs, tag = 'smem constant byte address 0x4 - core index']
  #allocation1 [shape = 'u32[72,128]{1,0:T(1,128)}', space=vmem, size = 0x9000, scoped, tag = 'internal scratch']
  #allocation2 [shape = 'f32[1,16,128]{2,1,0:T(8,128)}', space=vmem, size = 0x2000, scoped, tag = 'scratch operand']
  #allocation3 [shape = 'f32[16,1]{1,0:T(8,128)}', space=vmem, size = 0x2000, scoped, tag = 'scratch operand']
  #allocation4 [shape = 'f32[16,1]{1,0:T(8,128)}', space=vmem, size = 0x2000, scoped, tag = 'scratch operand']
  #allocation5 [shape = 'f32[16,1]{1,0:T(8,128)}', space=vmem, size = 0x2000, scoped, tag = 'scratch operand']
  %s0 = inlined_call_operand.hbm [shape: f32[16,128], index: 0, kind: input, shape index: {}]
  %s1 = inlined_call_operand.hbm [shape: f32[16,128], index: 1, kind: input, shape index: {}]
  %s2 = inlined_call_operand.hbm [shape: f32[128,128], index: 2, kind: input, shape index: {}]
  %s3 = inlined_call_operand.hbm [shape: f32[128,128], index: 3, kind: input, shape index: {}]
  %s4 = inlined_call_operand.vmem [shape: f32[1,128], index: 4, kind: input, shape index: {}]
  %s5 = inlined_call_operand.vmem [shape: f32[1,128], index: 5, kind: input, shape index: {}]
  %s6 = inlined_call_operand.vmem [shape: f32[1,128], index: 6, kind: input, shape index: {}]
  %s7 = inlined_call_operand.hbm [shape: f32[1,1], index: 7, kind: output, shape index: {}]
  %s8 = sld [smem:[#allocation0]]
  $region93: #{tpu_custom_call.1} parent=0
    _
  %s10 = ssub.s32 1, %s8
  %s11 = scalar_select 0, %s10, %s8
  $region1: #{tpu_custom_call.1} parent=0
    #allocation6 [shape = 'u8[8192]{0}', space=vmem, size = 0x2000, scoped, tag = 'input window, operand 0, single buffered']
    #allocation7 [shape = 's32[2]{0}', space=sflag, size = 0x8, scoped, tag = 'scoped memory for tpu_custom_call.1']
    #allocation8 [shape = 's32[2]{0}', space=sflag, size = 0x8, scoped, tag = 'scoped memory for tpu_custom_call.1']
    #allocation9 [shape = 'u8[16384]{0}', space=vmem, size = 0x4000, scoped, tag = 'input window, operand 1']
    #allocation10 [shape = 's32[2]{0}', space=sflag, size = 0x8, scoped, tag = 'scoped memory for tpu_custom_call.1']
    #allocation11 [shape = 'u8[131072]{0}', space=vmem, size = 0x20000, scoped, tag = 'input window, operand 2']
    #allocation12 [shape = 'u8[131072]{0}', space=vmem, size = 0x20000, scoped, tag = 'input window, operand 3']
    #allocation13 [shape = 's32[2]{0}', space=sflag, size = 0x8, scoped, tag = 'scoped memory for tpu_custom_call.1']
    #allocation14 [shape = 'u8[512]{0}', space=vmem, size = 0x400, scoped, tag = 'output window, operand 0, single buffered']
    %12 = vsyncpa [#allocation7], 0
    %13 = vsyncpa [#allocation10], 0
    %s14 = scalar_lea.sflag [#allocation10], 1
    %15 = vsyncpa %s14, 0
    %16 = vsyncpa [#allocation13], 0
    %s17 = scalar_lea.sflag [#allocation13], 1
    %18 = vsyncpa %s17, 0
    %19 = vsyncpa [#allocation8], 0
    loop: start=0, step=1, limit=4
    $region2: #{tpu_custom_call.1} parent=1 // loop_pre_header
      _
    $region3: #{tpu_custom_call.1} parent=1 // loop_header
      %s21 = sphi 0, %s25
      %p22 = scmp.ge.s32.totalorder %s21, 4
      %s29 = sphi 0, %s29
      %s31 = sphi 0, %s29
      %s32 = sphi 0, %s31
      %s46 = sphi 0, %s32
      %s58 = sphi 0, %s60
      %s61 = sphi 0, %s58
      %s62 = sphi 0, %s61
      %s78 = sphi 0, %s62
      %s88 = sphi 0, %s90
      %s91 = sphi 0, %s88
      %s92 = sphi 0, %s91
      %s108 = sphi 0, %s92
      %s120 = sphi 0, %s122
      %s123 = sphi 0, %s120
      %s124 = sphi 0, %s123
      %s140 = sphi 0, %s124
      %s152 = sphi 0, %s154
      %s155 = sphi 0, %s152
      %s156 = sphi 0, %s155
      %s172 = sphi 0, %s156
      %s182 = sphi 0, %s184
      %s185 = sphi 0, %s182
      %s186 = sphi 0, %s185
      %s202 = sphi 0, %s186
      %s212 = sphi 0, %s214
      %s215 = sphi 0, %s212
      %s216 = sphi 0, %s215
      %s232 = sphi 0, %s216
      %s236 = sphi 0, %s236
      %s238 = sphi 0, %s236
      %s239 = sphi 0, %s238
      %s253 = sphi 0, %s239
    $region4: #{tpu_custom_call.1} parent=1 // loop_header_branch
      %24 = sbr.rel (%p22) target = $region8
    $region5: #{tpu_custom_call.1} parent=1 // loop_body
      %s26 = ssub.s32 %s21, 1
      %s27 = ssub.s32 %s21, 2
      %s28 = sadd.s32 %s21, 1
      %s30 = sadd.s32 %s29, 1
      %p33 = scmp.eq.s32.totalorder %s21, 1
      %p34 = scmp.ne.s32.totalorder %s29, %s31
      %p35 = scmp.eq.s32.totalorder %s21, 0
      %p36 = por %p34, %p35
      %p37 = scmp.ne.s32.totalorder %s29, %s31
      %p38 = scmp.eq.s32.totalorder %s26, 1
      %p39 = por %p37, %p38
      %p40 = scmp.ne.s32.totalorder %s31, %s32
      %p41 = scmp.eq.s32.totalorder %s26, 0
      %p42 = por %p40, %p41
      %p43 = scmp.ne.s32.totalorder %s31, %s32
      %p44 = scmp.eq.s32.totalorder %s27, 1
      %p45 = por %p43, %p44
      %p47 = scmp.ne.s32.totalorder %s32, %s46
      %p48 = scmp.eq.s32.totalorder %s27, 0
      %p49 = por %p47, %p48
      %s50 = ssub.s32 %s21, 1
      %p51 = scmp.gt.s32.totalorder %s50, 0
      %s52 = scalar_select %p51, %s50, 0
      %s53 = ssub.s32 %s28, 1
      %p54 = scmp.gt.s32.totalorder %s53, 0
      %s55 = scalar_select %p54, %s53, 0
      %s56 = ssub.s32 %s52, %s55
      %p57 = scmp.eq.s32.totalorder %s56, 0
      %s59 = sadd.s32 %s58, 1
      %s60 = scalar_select %p57, %s58, %s59
      %p63 = pneg %p57
      %p64 = scmp.eq.s32.totalorder %s21, 1
      %p65 = por %p63, %p64
      %p66 = scmp.ne.s32.totalorder %s58, %s61
      %p67 = scmp.eq.s32.totalorder %s21, 0
      %p68 = por %p66, %p67
      %p69 = scmp.ne.s32.totalorder %s58, %s61
      %p70 = scmp.eq.s32.totalorder %s26, 1
      %p71 = por %p69, %p70
      %p72 = scmp.ne.s32.totalorder %s61, %s62
      %p73 = scmp.eq.s32.totalorder %s26, 0
      %p74 = por %p72, %p73
      %p75 = scmp.ne.s32.totalorder %s61, %s62
      %p76 = scmp.eq.s32.totalorder %s27, 1
      %p77 = por %p75, %p76
      %p79 = scmp.ne.s32.totalorder %s62, %s78
      %p80 = scmp.eq.s32.totalorder %s27, 0
      %p81 = por %p79, %p80
      %p82 = scmp.lt.s32.totalorder %s21, 0
      %s83 = scalar_select %p82, %s21, 0
      %p84 = scmp.lt.s32.totalorder %s28, 0
      %s85 = scalar_select %p84, %s28, 0
      %s86 = ssub.s32 %s83, %s85
      %p87 = scmp.eq.s32.totalorder %s86, 0
      %s89 = sadd.s32 %s88, 1
      %s90 = scalar_select %p87, %s88, %s89
      %p93 = pneg %p87
      %p94 = scmp.eq.s32.totalorder %s21, 1
      %p95 = por %p93, %p94
      %p96 = scmp.ne.s32.totalorder %s88, %s91
      %p97 = scmp.eq.s32.totalorder %s21, 0
      %p98 = por %p96, %p97
      %p99 = scmp.ne.s32.totalorder %s88, %s91
      %p100 = scmp.eq.s32.totalorder %s26, 1
      %p101 = por %p99, %p100
      %p102 = scmp.ne.s32.totalorder %s91, %s92
      %p103 = scmp.eq.s32.totalorder %s26, 0
      %p104 = por %p102, %p103
      %p105 = scmp.ne.s32.totalorder %s91, %s92
      %p106 = scmp.eq.s32.totalorder %s27, 1
      %p107 = por %p105, %p106
      %p109 = scmp.ne.s32.totalorder %s92, %s108
      %p110 = scmp.eq.s32.totalorder %s27, 0
      %p111 = por %p109, %p110
      %s112 = ssub.s32 %s21, 1
      %p113 = scmp.gt.s32.totalorder %s112, 0
      %s114 = scalar_select %p113, %s112, 0
      %s115 = ssub.s32 %s28, 1
      %p116 = scmp.gt.s32.totalorder %s115, 0
      %s117 = scalar_select %p116, %s115, 0
      %s118 = ssub.s32 %s114, %s117
      %p119 = scmp.eq.s32.totalorder %s118, 0
      %s121 = sadd.s32 %s120, 1
      %s122 = scalar_select %p119, %s120, %s121
      %p125 = pneg %p119
      %p126 = scmp.eq.s32.totalorder %s21, 1
      %p127 = por %p125, %p126
      %p128 = scmp.ne.s32.totalorder %s120, %s123
      %p129 = scmp.eq.s32.totalorder %s21, 0
      %p130 = por %p128, %p129
      %p131 = scmp.ne.s32.totalorder %s120, %s123
      %p132 = scmp.eq.s32.totalorder %s26, 1
      %p133 = por %p131, %p132
      %p134 = scmp.ne.s32.totalorder %s123, %s124
      %p135 = scmp.eq.s32.totalorder %s26, 0
      %p136 = por %p134, %p135
      %p137 = scmp.ne.s32.totalorder %s123, %s124
      %p138 = scmp.eq.s32.totalorder %s27, 1
      %p139 = por %p137, %p138
      %p141 = scmp.ne.s32.totalorder %s124, %s140
      %p142 = scmp.eq.s32.totalorder %s27, 0
      %p143 = por %p141, %p142
      %s144 = ssub.s32 %s21, 1
      %p145 = scmp.gt.s32.totalorder %s144, 0
      %s146 = scalar_select %p145, %s144, 0
      %s147 = ssub.s32 %s28, 1
      %p148 = scmp.gt.s32.totalorder %s147, 0
      %s149 = scalar_select %p148, %s147, 0
      %s150 = ssub.s32 %s146, %s149
      %p151 = scmp.eq.s32.totalorder %s150, 0
      %s153 = sadd.s32 %s152, 1
      %s154 = scalar_select %p151, %s152, %s153
      %p157 = pneg %p151
      %p158 = scmp.eq.s32.totalorder %s21, 1
      %p159 = por %p157, %p158
      %p160 = scmp.ne.s32.totalorder %s152, %s155
      %p161 = scmp.eq.s32.totalorder %s21, 0
      %p162 = por %p160, %p161
      %p163 = scmp.ne.s32.totalorder %s152, %s155
      %p164 = scmp.eq.s32.totalorder %s26, 1
      %p165 = por %p163, %p164
      %p166 = scmp.ne.s32.totalorder %s155, %s156
      %p167 = scmp.eq.s32.totalorder %s26, 0
      %p168 = por %p166, %p167
      %p169 = scmp.ne.s32.totalorder %s155, %s156
      %p170 = scmp.eq.s32.totalorder %s27, 1
      %p171 = por %p169, %p170
      %p173 = scmp.ne.s32.totalorder %s156, %s172
      %p174 = scmp.eq.s32.totalorder %s27, 0
      %p175 = por %p173, %p174
      %p176 = scmp.lt.s32.totalorder %s21, 0
      %s177 = scalar_select %p176, %s21, 0
      %p178 = scmp.lt.s32.totalorder %s28, 0
      %s179 = scalar_select %p178, %s28, 0
      %s180 = ssub.s32 %s177, %s179
      %p181 = scmp.eq.s32.totalorder %s180, 0
      %s183 = sadd.s32 %s182, 1
      %s184 = scalar_select %p181, %s182, %s183
      %p187 = pneg %p181
      %p188 = scmp.eq.s32.totalorder %s21, 1
      %p189 = por %p187, %p188
      %p190 = scmp.ne.s32.totalorder %s182, %s185
      %p191 = scmp.eq.s32.totalorder %s21, 0
      %p192 = por %p190, %p191
      %p193 = scmp.ne.s32.totalorder %s182, %s185
      %p194 = scmp.eq.s32.totalorder %s26, 1
      %p195 = por %p193, %p194
      %p196 = scmp.ne.s32.totalorder %s185, %s186
      %p197 = scmp.eq.s32.totalorder %s26, 0
      %p198 = por %p196, %p197
      %p199 = scmp.ne.s32.totalorder %s185, %s186
      %p200 = scmp.eq.s32.totalorder %s27, 1
      %p201 = por %p199, %p200
      %p203 = scmp.ne.s32.totalorder %s186, %s202
      %p204 = scmp.eq.s32.totalorder %s27, 0
      %p205 = por %p203, %p204
      %p206 = scmp.lt.s32.totalorder %s21, 0
      %s207 = scalar_select %p206, %s21, 0
      %p208 = scmp.lt.s32.totalorder %s28, 0
      %s209 = scalar_select %p208, %s28, 0
      %s210 = ssub.s32 %s207, %s209
      %p211 = scmp.eq.s32.totalorder %s210, 0
      %s213 = sadd.s32 %s212, 1
      %s214 = scalar_select %p211, %s212, %s213
      %p217 = pneg %p211
      %p218 = scmp.eq.s32.totalorder %s21, 1
      %p219 = por %p217, %p218
      %p220 = scmp.ne.s32.totalorder %s212, %s215
      %p221 = scmp.eq.s32.totalorder %s21, 0
      %p222 = por %p220, %p221
      %p223 = scmp.ne.s32.totalorder %s212, %s215
      %p224 = scmp.eq.s32.totalorder %s26, 1
      %p225 = por %p223, %p224
      %p226 = scmp.ne.s32.totalorder %s215, %s216
      %p227 = scmp.eq.s32.totalorder %s26, 0
      %p228 = por %p226, %p227
      %p229 = scmp.ne.s32.totalorder %s215, %s216
      %p230 = scmp.eq.s32.totalorder %s27, 1
      %p231 = por %p229, %p230
      %p233 = scmp.ne.s32.totalorder %s216, %s232
      %p234 = scmp.eq.s32.totalorder %s27, 0
      %p235 = por %p233, %p234
      %s237 = sadd.s32 %s236, 1
      %p240 = scmp.eq.s32.totalorder %s21, 1
      %p241 = scmp.ne.s32.totalorder %s236, %s238
      %p242 = scmp.eq.s32.totalorder %s21, 0
      %p243 = por %p241, %p242
      %p244 = scmp.ne.s32.totalorder %s236, %s238
      %p245 = scmp.eq.s32.totalorder %s26, 1
      %p246 = por %p244, %p245
      %p247 = scmp.ne.s32.totalorder %s238, %s239
      %p248 = scmp.eq.s32.totalorder %s26, 0
      %p249 = por %p247, %p248
      %p250 = scmp.ne.s32.totalorder %s238, %s239
      %p251 = scmp.eq.s32.totalorder %s27, 1
      %p252 = por %p250, %p251
      %p254 = scmp.ne.s32.totalorder %s239, %s253
      %p255 = scmp.eq.s32.totalorder %s27, 0
      %p256 = por %p254, %p255
      %p257 = scmp.le.s32.totalorder 1, %s21
      %p258 = scmp.lt.s32.totalorder %s21, 3
      %p259 = pnand %p257, %p258
      %p260 = pneg %p259
      // Predicated region
      $region9: #{tpu_custom_call.1} parent=5 // pred_check
        _
      $region10: #{tpu_custom_call.1} parent=5 // pred_check_branch
        %262 = sbr.rel (%p259) target = $region12
      $region11: #{tpu_custom_call.1} parent=5 // pred_region
        %s263 = ssub.s32 %s21, 1
        // Predicated region
        $region13: #{tpu_custom_call.1} parent=11 // pred_check
          %p264 = pneg %p42
        $region14: #{tpu_custom_call.1} parent=11 // pred_check_branch
          %266 = sbr.rel (%p264) target = $region16
        $region15: #{tpu_custom_call.1} parent=11 // pred_region
          %268 = vsyncadd [#allocation7], 0
          %s269 = sshll.u32 %s0, 4
          %s270 = int_to_ptr.hbm [resolvable:$true] %s269
          %s271 = sshll.u32 [#allocation6], 4
          %s272 = int_to_ptr.vmem [resolvable:$true] %s271
          %277 = dma.hbm_to_vmem [thread:$0]  %s270, 256, %s272, [#allocation7], 128, 128, 8
        $region16: #{tpu_custom_call.1} parent=11 // pred_fallthru
          _
      $region12: #{tpu_custom_call.1} parent=5 // pred_fallthru
        _
      %p278 = scmp.lt.s32.totalorder %s21, 2
      // Predicated region
      $region17: #{tpu_custom_call.1} parent=5 // pred_check
        %p279 = pneg %p278
      $region18: #{tpu_custom_call.1} parent=5 // pred_check_branch
        %281 = sbr.rel (%p279) target = $region20
      $region19: #{tpu_custom_call.1} parent=5 // pred_region
        // Predicated region
        $region21: #{tpu_custom_call.1} parent=19 // pred_check
          %p282 = pneg %p68
        $region22: #{tpu_custom_call.1} parent=19 // pred_check_branch
          %284 = sbr.rel (%p282) target = $region24
        $region23: #{tpu_custom_call.1} parent=19 // pred_region
          %s285 = sand.u32 %s21, 1
          %s286 = scalar_lea.sflag [#allocation10], %s285
          %s287 = sand.u32 %s58, 1
          %s288 = smul.addr %s287, 16
          %s289 = scalar_lea.vmem [#allocation9], %s288
          %s290 = ssub.s32 %s21, 1
          %p291 = scmp.gt.s32.totalorder %s290, 0
          %s292 = scalar_select %p291, %s290, 0
          %294 = vsyncadd %s286, 0
          %s295 = smul.addr %s292, 8
          %s296 = scalar_lea.hbm %s1, %s295
          %s297 = sshll.u32 %s296, 4
          %s298 = int_to_ptr.hbm [resolvable:$true] %s297
          %s299 = sshll.u32 %s289, 4
          %s300 = int_to_ptr.vmem [resolvable:$true] %s299
          %305 = dma.hbm_to_vmem [thread:$0]  %s298, 256, %s300, %s286, 128, 128, 8
        $region24: #{tpu_custom_call.1} parent=19 // pred_fallthru
          _
        // Predicated region
        $region25: #{tpu_custom_call.1} parent=19 // pred_check
          %p306 = pneg %p98
        $region26: #{tpu_custom_call.1} parent=19 // pred_check_branch
          %308 = sbr.rel (%p306) target = $region28
        $region27: #{tpu_custom_call.1} parent=19 // pred_region
          %s309 = sand.u32 %s21, 1
          %s310 = scalar_lea.sflag [#allocation10], %s309
          %s311 = sand.u32 %s88, 1
          %s312 = smul.addr %s311, 128
          %s313 = scalar_lea.vmem [#allocation11], %s312
          %p314 = scmp.lt.s32.totalorder %s21, 0
          %s315 = scalar_select %p314, %s21, 0
          %317 = vsyncadd %s310, 0
          %s318 = smul.addr %s315, 8
          %s319 = scalar_lea.hbm %s2, %s318
          %s320 = sshll.u32 %s319, 4
          %s321 = int_to_ptr.hbm [resolvable:$true] %s320
          %s322 = sshll.u32 %s313, 4
          %s323 = int_to_ptr.vmem [resolvable:$true] %s322
          %328 = dma.hbm_to_vmem [thread:$0]  %s321, 2048, %s323, %s310, 128, 128, 8
        $region28: #{tpu_custom_call.1} parent=19 // pred_fallthru
          _
        // Predicated region
        $region29: #{tpu_custom_call.1} parent=19 // pred_check
          %p329 = pneg %p130
        $region30: #{tpu_custom_call.1} parent=19 // pred_check_branch
          %331 = sbr.rel (%p329) target = $region32
        $region31: #{tpu_custom_call.1} parent=19 // pred_region
          %s332 = sand.u32 %s120, 1
          %s333 = scalar_lea.sflag [#allocation13], %s332
          %s334 = sand.u32 %s120, 1
          %s335 = smul.addr %s334, 128
          %s336 = scalar_lea.vmem [#allocation12], %s335
          %s337 = ssub.s32 %s21, 1
          %p338 = scmp.gt.s32.totalorder %s337, 0
          %s339 = scalar_select %p338, %s337, 0
          %341 = vsyncadd %s333, 0
          %s342 = smul.addr %s339, 8
          %s343 = scalar_lea.hbm %s3, %s342
          %s344 = sshll.u32 %s343, 4
          %s345 = int_to_ptr.hbm [resolvable:$true] %s344
          %s346 = sshll.u32 %s336, 4
          %s347 = int_to_ptr.vmem [resolvable:$true] %s346
          %352 = dma.hbm_to_vmem [thread:$0]  %s345, 2048, %s347, %s333, 128, 128, 8
        $region32: #{tpu_custom_call.1} parent=19 // pred_fallthru
          _
        // Predicated region
        $region33: #{tpu_custom_call.1} parent=19 // pred_check
          %p353 = pneg %p162
        $region34: #{tpu_custom_call.1} parent=19 // pred_check_branch
          %355 = sbr.rel (%p353) target = $region36
        $region35: #{tpu_custom_call.1} parent=19 // pred_region
          %s356 = ssub.s32 %s21, 1
          %p357 = scmp.gt.s32.totalorder %s356, 0
          %s358 = scalar_select %p357, %s356, 0
          %p359 = scmp.lt.s32.totalorder %s358, 0
          %s360 = scalar_select %p359, %s358, 0
          %s361 = scalar_lea.vmem %s4, %s360
          %s362 = ssub.s32 %s21, 1
          %p363 = scmp.gt.s32.totalorder %s362, 0
          %s364 = scalar_select %p363, %s362, 0
        $region36: #{tpu_custom_call.1} parent=19 // pred_fallthru
          _
        // Predicated region
        $region37: #{tpu_custom_call.1} parent=19 // pred_check
          %p365 = pneg %p192
        $region38: #{tpu_custom_call.1} parent=19 // pred_check_branch
          %367 = sbr.rel (%p365) target = $region40
        $region39: #{tpu_custom_call.1} parent=19 // pred_region
          %p368 = scmp.lt.s32.totalorder %s21, 0
          %s369 = scalar_select %p368, %s21, 0
          %p370 = scmp.lt.s32.totalorder %s369, 0
          %s371 = scalar_select %p370, %s369, 0
          %s372 = scalar_lea.vmem %s5, %s371
          %p373 = scmp.lt.s32.totalorder %s21, 0
          %s374 = scalar_select %p373, %s21, 0
        $region40: #{tpu_custom_call.1} parent=19 // pred_fallthru
          _
        // Predicated region
        $region41: #{tpu_custom_call.1} parent=19 // pred_check
          %p375 = pneg %p222
        $region42: #{tpu_custom_call.1} parent=19 // pred_check_branch
          %377 = sbr.rel (%p375) target = $region44
        $region43: #{tpu_custom_call.1} parent=19 // pred_region
          %p378 = scmp.lt.s32.totalorder %s21, 0
          %s379 = scalar_select %p378, %s21, 0
          %p380 = scmp.lt.s32.totalorder %s379, 0
          %s381 = scalar_select %p380, %s379, 0
          %s382 = scalar_lea.vmem %s6, %s381
          %p383 = scmp.lt.s32.totalorder %s21, 0
          %s384 = scalar_select %p383, %s21, 0
        $region44: #{tpu_custom_call.1} parent=19 // pred_fallthru
          _
      $region20: #{tpu_custom_call.1} parent=5 // pred_fallthru
        _
      %p385 = scmp.le.s32.totalorder 1, %s21
      %p386 = scmp.lt.s32.totalorder %s21, 3
      %p387 = pnand %p385, %p386
      %p388 = pneg %p387
      // Predicated region
      $region45: #{tpu_custom_call.1} parent=5 // pred_check
        _
      $region46: #{tpu_custom_call.1} parent=5 // pred_check_branch
        %390 = sbr.rel (%p387) target = $region48
      $region47: #{tpu_custom_call.1} parent=5 // pred_region
        %s391 = ssub.s32 %s21, 1
        // Predicated region
        $region49: #{tpu_custom_call.1} parent=47 // pred_check
          %p392 = pneg %p42
        $region50: #{tpu_custom_call.1} parent=47 // pred_check_branch
          %394 = sbr.rel (%p392) target = $region52
        $region51: #{tpu_custom_call.1} parent=47 // pred_region
          %396 = dma.done [#allocation7], 256
        $region52: #{tpu_custom_call.1} parent=47 // pred_fallthru
          _
        %s397 = sand.u32 %s26, 1
        %s398 = scalar_lea.sflag [#allocation10], %s397
        %s399 = sand.u32 %s61, 1
        %s400 = smul.addr %s399, 16
        %s401 = scalar_lea.vmem [#allocation9], %s400
        // Predicated region
        $region53: #{tpu_custom_call.1} parent=47 // pred_check
          %p402 = pneg %p74
        $region54: #{tpu_custom_call.1} parent=47 // pred_check_branch
          %404 = sbr.rel (%p402) target = $region56
        $region55: #{tpu_custom_call.1} parent=47 // pred_region
          %406 = dma.done %s398, 256
        $region56: #{tpu_custom_call.1} parent=47 // pred_fallthru
          _
        %s407 = sand.u32 %s26, 1
        %s408 = scalar_lea.sflag [#allocation10], %s407
        %s409 = sand.u32 %s91, 1
        %s410 = smul.addr %s409, 128
        %s411 = scalar_lea.vmem [#allocation11], %s410
        // Predicated region
        $region57: #{tpu_custom_call.1} parent=47 // pred_check
          %p412 = pneg %p104
        $region58: #{tpu_custom_call.1} parent=47 // pred_check_branch
          %414 = sbr.rel (%p412) target = $region60
        $region59: #{tpu_custom_call.1} parent=47 // pred_region
          %416 = dma.done %s408, 2048
        $region60: #{tpu_custom_call.1} parent=47 // pred_fallthru
          _
        %s417 = sand.u32 %s123, 1
        %s418 = scalar_lea.sflag [#allocation13], %s417
        %s419 = sand.u32 %s123, 1
        %s420 = smul.addr %s419, 128
        %s421 = scalar_lea.vmem [#allocation12], %s420
        // Predicated region
        $region61: #{tpu_custom_call.1} parent=47 // pred_check
          %p422 = pneg %p136
        $region62: #{tpu_custom_call.1} parent=47 // pred_check_branch
          %424 = sbr.rel (%p422) target = $region64
        $region63: #{tpu_custom_call.1} parent=47 // pred_region
          %426 = dma.done %s418, 2048
        $region64: #{tpu_custom_call.1} parent=47 // pred_fallthru
          _
        %p427 = pneg %p42
        %p428 = pneg %p39
        %s429 = sand.u32 %s26, 1
        %s430 = scalar_lea.sflag [#allocation10], %s429
        %s431 = sand.u32 %s61, 1
        %s432 = smul.addr %s431, 16
        %s433 = scalar_lea.vmem [#allocation9], %s432
        %p434 = pneg %p74
        %p435 = pneg %p71
        %s436 = sand.u32 %s26, 1
        %s437 = scalar_lea.sflag [#allocation10], %s436
        %s438 = sand.u32 %s91, 1
        %s439 = smul.addr %s438, 128
        %s440 = scalar_lea.vmem [#allocation11], %s439
        %p441 = pneg %p104
        %p442 = pneg %p101
        %s443 = sand.u32 %s123, 1
        %s444 = scalar_lea.sflag [#allocation13], %s443
        %s445 = sand.u32 %s123, 1
        %s446 = smul.addr %s445, 128
        %s447 = scalar_lea.vmem [#allocation12], %s446
        %p448 = pneg %p136
        %p449 = pneg %p133
        %s450 = ssub.s32 %s26, 1
        %p451 = scmp.gt.s32.totalorder %s450, 0
        %s452 = scalar_select %p451, %s450, 0
        %p453 = scmp.lt.s32.totalorder %s452, 0
        %s454 = scalar_select %p453, %s452, 0
        %s455 = scalar_lea.vmem %s4, %s454
        %p456 = pneg %p168
        %p457 = pneg %p165
        %p458 = scmp.lt.s32.totalorder %s26, 0
        %s459 = scalar_select %p458, %s26, 0
        %p460 = scmp.lt.s32.totalorder %s459, 0
        %s461 = scalar_select %p460, %s459, 0
        %s462 = scalar_lea.vmem %s5, %s461
        %p463 = pneg %p198
        %p464 = pneg %p195
        %p465 = scmp.lt.s32.totalorder %s26, 0
        %s466 = scalar_select %p465, %s26, 0
        %p467 = scmp.lt.s32.totalorder %s466, 0
        %s468 = scalar_select %p467, %s466, 0
        %s469 = scalar_lea.vmem %s6, %s468
        %p470 = pneg %p228
        %p471 = pneg %p225
        %p472 = pneg %p249
        %p473 = pneg %p246
        %s474 = ssub.s32 %s26, 1
        %p475 = scmp.gt.s32.totalorder %s474, 0
        %s476 = scalar_select %p475, %s474, 0
        %p477 = scmp.lt.s32.totalorder %s26, 0
        %s478 = scalar_select %p477, %s26, 0
        %s479 = ssub.s32 %s26, 1
        %p480 = scmp.gt.s32.totalorder %s479, 0
        %s481 = scalar_select %p480, %s479, 0
        %s482 = ssub.s32 %s26, 1
        %p483 = scmp.gt.s32.totalorder %s482, 0
        %s484 = scalar_select %p483, %s482, 0
        %p485 = scmp.lt.s32.totalorder %s484, 0
        %s486 = scalar_select %p485, %s484, 0
        %s487 = scalar_lea.vmem %s4, %s486
        %s488 = ssub.s32 %s26, 1
        %p489 = scmp.gt.s32.totalorder %s488, 0
        %s490 = scalar_select %p489, %s488, 0
        %p491 = scmp.lt.s32.totalorder %s26, 0
        %s492 = scalar_select %p491, %s26, 0
        %p493 = scmp.lt.s32.totalorder %s492, 0
        %s494 = scalar_select %p493, %s492, 0
        %s495 = scalar_lea.vmem %s5, %s494
        %p496 = scmp.lt.s32.totalorder %s26, 0
        %s497 = scalar_select %p496, %s26, 0
        %p498 = scmp.lt.s32.totalorder %s26, 0
        %s499 = scalar_select %p498, %s26, 0
        %p500 = scmp.lt.s32.totalorder %s499, 0
        %s501 = scalar_select %p500, %s499, 0
        %s502 = scalar_lea.vmem %s6, %s501
        %p503 = scmp.lt.s32.totalorder %s26, 0
        %s504 = scalar_select %p503, %s26, 0
        %p505 = scmp.eq.s32.totalorder %s26, 0
        // Predicated region
        $region65: #{tpu_custom_call.1} parent=47 // pred_check
          %p506 = pneg %p505
        $region66: #{tpu_custom_call.1} parent=47 // pred_check_branch
          %508 = sbr.rel (%p506) target = $region68
        $region67: #{tpu_custom_call.1} parent=47 // pred_region
          %vm509 = vcmask 7168
          %510 = vst.msk [vmem:[#allocation3] sm:$0xff] %vm509, 0.0
          %511 = vst.msk [vmem:[#allocation3 + $0x8] sm:$0xff] %vm509, 0.0
          %512 = vst.msk [vmem:[#allocation4] sm:$0xff] %vm509, 0.0
          %513 = vst.msk [vmem:[#allocation4 + $0x8] sm:$0xff] %vm509, 0.0
          %514 = vst.msk [vmem:[#allocation5] sm:$0xff] %vm509, 0.0
          %515 = vst.msk [vmem:[#allocation5 + $0x8] sm:$0xff] %vm509, 0.0
        $region68: #{tpu_custom_call.1} parent=47 // pred_fallthru
          _
        %p516 = scmp.lt.s32.totalorder %s26, 1
        // Predicated region
        $region69: #{tpu_custom_call.1} parent=47 // pred_check
          %p517 = pneg %p516
        $region70: #{tpu_custom_call.1} parent=47 // pred_check_branch
          %519 = sbr.rel (%p517) target = $region72
        $region71: #{tpu_custom_call.1} parent=47 // pred_region
          %v520 = vld [vmem:[#allocation6] sm:$0xff]
          %v521 = vld [vmem:[#allocation6 + $0x8] sm:$0xff]
          %v522 = vld [vmem:[%s411] sm:$0xff]
          %v523 = vld [vmem:[%s411 + $0x8] sm:$0xff]
          %v524 = vld [vmem:[%s411 + $0x10] sm:$0xff]
          %v525 = vld [vmem:[%s411 + $0x18] sm:$0xff]
          %v526 = vld [vmem:[%s411 + $0x20] sm:$0xff]
          %v527 = vld [vmem:[%s411 + $0x28] sm:$0xff]
          %v528 = vld [vmem:[%s411 + $0x30] sm:$0xff]
          %v529 = vld [vmem:[%s411 + $0x38] sm:$0xff]
          %v530 = vld [vmem:[%s411 + $0x40] sm:$0xff]
          %v531 = vld [vmem:[%s411 + $0x48] sm:$0xff]
          %v532 = vld [vmem:[%s411 + $0x50] sm:$0xff]
          %v533 = vld [vmem:[%s411 + $0x58] sm:$0xff]
          %v534 = vld [vmem:[%s411 + $0x60] sm:$0xff]
          %v535 = vld [vmem:[%s411 + $0x68] sm:$0xff]
          %v536 = vld [vmem:[%s411 + $0x70] sm:$0xff]
          %v537 = vld [vmem:[%s411 + $0x78] sm:$0xff]
          %538 = vmatpush.msra.mxu0 %v537
          %539 = vmatpush.msra.mxu0 %v536
          %540 = vmatpush.msra.mxu0 %v535
          %541 = vmatpush.msra.mxu0 %v534
          %542 = vmatpush.msra.mxu0 %v533
          %543 = vmatpush.msra.mxu0 %v532
          %544 = vmatpush.msra.mxu0 %v531
          %545 = vmatpush.msra.mxu0 %v530
          %546 = vmatpush.msra.mxu0 %v529
          %547 = vmatpush.msra.mxu0 %v528
          %548 = vmatpush.msra.mxu0 %v527
          %549 = vmatpush.msra.mxu0 %v526
          %550 = vmatpush.msra.mxu0 %v525
          %551 = vmatpush.msra.mxu0 %v524
          %552 = vmatpush.msra.mxu0 %v523
          %553 = vmatpush.msra.mxu0 %v522
          %554 = vmatmul.f32.gmra.mxu0 %v520
          %v555 = vpop.f32.mrf.mxu0
          %v556 = vadd.f32 0.0, %v555
          %557 = vmatmul.f32.gmra.mxu0 %v521
          %v558 = vpop.f32.mrf.mxu0
          %v559 = vadd.f32 0.0, %v558
          %560 = vdwg.mxu0
          %v561 = vadd.f32 %v556, %v559
          %v562 = vrot.slane %v561, 4
          %v563 = vadd.f32 %v561, %v562
          %v564 = vrot.slane %v563, 2
          %v565 = vadd.f32 %v563, %v564
          %v566 = vrot.slane %v565, 1
          %v567 = vadd.f32 %v565, %v566
          %v568 = vrcp.pop 16.0
          %v569 = vmul.f32 16.0, %v568
          %v570 = vsub.f32 1.0, %v569
          %v571 = vmul.f32 %v568, %v570
          %v572 = vadd.f32 %v568, %v571
          %vm573 = vweird.f32 %v568
          %v574 = vsel %vm573, %v568, %v572
          %v575 = vmul.f32 %v567, %v574
          %v576 = vsub.f32 %v556, %v575
          %v577 = vsub.f32 %v559, %v575
          %v578 = vmul.f32 %v576, %v576
          %v579 = vmul.f32 %v577, %v577
          %v580 = vadd.f32 %v578, %v579
          %v581 = vrot.slane %v580, 4
          %v582 = vadd.f32 %v580, %v581
          %v583 = vrot.slane %v582, 2
          %v584 = vadd.f32 %v582, %v583
          %v585 = vrot.slane %v584, 1
          %v586 = vadd.f32 %v584, %v585
          %v587 = vmul.f32 %v586, %v574
          %v588 = vld [vmem:[%s495] sm:$0x1]
          %v589 = vadd.f32 %v587, 1e-05
          %v590 = vrsqrt.pop %v589
          %v591 = vmul.f32 %v590, %v589
          %v592 = vmul.f32 %v591, %v590
          %v593 = vmul.f32 0.5, %v592
          %v594 = vsub.f32 1.5, %v593
          %v595 = vmul.f32 %v590, %v594
          %vm596 = vweird.f32 %v589
          %vm597 = vweird.f32 %v590
          %vm598 = vmor %vm596, %vm597
          %v599 = vsel %vm598, %v590, %v595
          %v600 = vmul.f32 %v588, %v599
          %v602 = vperm.slane %v600, 0
          %v604 = vmul.f32 %v576, %v602
          %v605 = vmul.f32 %v577, %v602
          %v606 = vld [vmem:[%s502] sm:$0x1]
          %v608 = vperm.slane %v606, 0
          %v610 = vadd.f32 %v604, %v608
          %v611 = vadd.f32 %v605, %v608
          %v612 = vmax.f32 %v610, 0.0
          %v613 = vmax.f32 %v611, 0.0
          %s614 = smul.u32 %s26, 16
          %s615 = scalar_lea.vmem [#allocation2], %s614
          %616 = vst [vmem:[%s615] sm:$0xff] %v612
          %617 = vst [vmem:[%s615 + $0x8] sm:$0xff] %v613
        $region72: #{tpu_custom_call.1} parent=47 // pred_fallthru
          _
        %p618 = scmp.ge.s32.totalorder %s26, 1
        // Predicated region
        $region73: #{tpu_custom_call.1} parent=47 // pred_check
          %p619 = pneg %p618
        $region74: #{tpu_custom_call.1} parent=47 // pred_check_branch
          %621 = sbr.rel (%p619) target = $region76
        $region75: #{tpu_custom_call.1} parent=47 // pred_region
          %v622 = vld [vmem:[#allocation2] sm:$0xff]
          %v623 = vld [vmem:[#allocation2 + $0x8] sm:$0xff]
          %v624 = vld [vmem:[%s421] sm:$0xff]
          %v625 = vld [vmem:[%s421 + $0x8] sm:$0xff]
          %v626 = vld [vmem:[%s421 + $0x10] sm:$0xff]
          %v627 = vld [vmem:[%s421 + $0x18] sm:$0xff]
          %v628 = vld [vmem:[%s421 + $0x20] sm:$0xff]
          %v629 = vld [vmem:[%s421 + $0x28] sm:$0xff]
          %v630 = vld [vmem:[%s421 + $0x30] sm:$0xff]
          %v631 = vld [vmem:[%s421 + $0x38] sm:$0xff]
          %v632 = vld [vmem:[%s421 + $0x40] sm:$0xff]
          %v633 = vld [vmem:[%s421 + $0x48] sm:$0xff]
          %v634 = vld [vmem:[%s421 + $0x50] sm:$0xff]
          %v635 = vld [vmem:[%s421 + $0x58] sm:$0xff]
          %v636 = vld [vmem:[%s421 + $0x60] sm:$0xff]
          %v637 = vld [vmem:[%s421 + $0x68] sm:$0xff]
          %v638 = vld [vmem:[%s421 + $0x70] sm:$0xff]
          %v639 = vld [vmem:[%s421 + $0x78] sm:$0xff]
          %v640 = vld [vmem:[%s487] sm:$0x1]
          %v642 = vperm.slane %v640, 0
          %644 = vmatpush.msra.mxu0 %v639
          %645 = vmatpush.msra.mxu0 %v638
          %646 = vmatpush.msra.mxu0 %v637
          %647 = vmatpush.msra.mxu0 %v636
          %648 = vmatpush.msra.mxu0 %v635
          %649 = vmatpush.msra.mxu0 %v634
          %650 = vmatpush.msra.mxu0 %v633
          %651 = vmatpush.msra.mxu0 %v632
          %652 = vmatpush.msra.mxu0 %v631
          %653 = vmatpush.msra.mxu0 %v630
          %654 = vmatpush.msra.mxu0 %v629
          %655 = vmatpush.msra.mxu0 %v628
          %656 = vmatpush.msra.mxu0 %v627
          %657 = vmatpush.msra.mxu0 %v626
          %658 = vmatpush.msra.mxu0 %v625
          %659 = vmatpush.msra.mxu0 %v624
          %660 = vmatmul.f32.gmra.mxu0 %v622
          %v661 = vpop.f32.mrf.mxu0
          %v662 = vadd.f32 %v642, %v661
          %663 = vmatmul.f32.gmra.mxu0 %v623
          %v664 = vpop.f32.mrf.mxu0
          %v665 = vadd.f32 %v642, %v664
          %666 = vdwg.mxu0
          %v667 = vld [vmem:[%s401] sm:$0xff]
          %v668 = vld [vmem:[%s401 + $0x8] sm:$0xff]
          %v669 = vsub.f32 %v662, %v667
          %v670 = vsub.f32 %v665, %v668
          %v671 = vld [vmem:[#allocation3] sm:$0xff]
          %v672 = vld [vmem:[#allocation3 + $0x8] sm:$0xff]
          %v673 = vmul.f32 %v669, %v669
          %v674 = vmul.f32 %v670, %v670
          %675 = vadd.xlane.f32.xlu0 %v673
          %v676 = vpop.xlane.xlu0 %675
          %677 = vadd.xlane.f32.xlu0 %v674
          %v678 = vpop.xlane.xlu0 %677
          %v679 = vadd.f32 %v671, %v676
          %v680 = vadd.f32 %v672, %v678
          %vm681 = vcmask 7168
          %682 = vst.msk [vmem:[#allocation3] sm:$0xff] %vm681, %v679
          %683 = vst.msk [vmem:[#allocation3 + $0x8] sm:$0xff] %vm681, %v680
        $region76: #{tpu_custom_call.1} parent=47 // pred_fallthru
          _
        %p684 = scmp.eq.s32.totalorder %s26, 1
        // Predicated region
        $region77: #{tpu_custom_call.1} parent=47 // pred_check
          %p685 = pneg %p684
        $region78: #{tpu_custom_call.1} parent=47 // pred_check_branch
          %687 = sbr.rel (%p685) target = $region80
        $region79: #{tpu_custom_call.1} parent=47 // pred_region
          %v688 = vld [vmem:[#allocation3] sm:$0xff]
          %v689 = vld [vmem:[#allocation3 + $0x8] sm:$0xff]
          %vm690 = vcmask 7168
          %v691 = vsel %vm690, %v688, 0.0
          %v692 = vsel %vm690, %v689, 0.0
          %v693 = vadd.f32 %v691, %v692
          %694 = vadd.xlane.f32.xlu0 %v693
          %v695 = vpop.xlane.xlu0 %694
          %v696 = vrot.slane %v695, 4
          %v697 = vadd.f32 %v695, %v696
          %v698 = vrot.slane %v697, 2
          %v699 = vadd.f32 %v697, %v698
          %v700 = vrot.slane %v699, 1
          %v701 = vadd.f32 %v699, %v700
          %s702 = vtos %v701
          %s703 = smul.f32 %s702, 0.00048828125
          %v704 = vstv %s703
          %vm705 = vcmask 0
          %706 = vst.msk [vmem:[#allocation14] sm:$0x1] %vm705, %v704
        $region80: #{tpu_custom_call.1} parent=47 // pred_fallthru
          _
        // Predicated region
        $region81: #{tpu_custom_call.1} parent=47 // pred_check
          %p707 = pneg %p246
        $region82: #{tpu_custom_call.1} parent=47 // pred_check_branch
          %709 = sbr.rel (%p707) target = $region84
        $region83: #{tpu_custom_call.1} parent=47 // pred_region
          %711 = vsyncadd [#allocation8], 0
          %s713 = sshll.u32 [#allocation14], 4
          %s714 = int_to_ptr.vmem [resolvable:$true] %s713
          %s715 = sshll.u32 %s7, 4
          %s716 = int_to_ptr.hbm [resolvable:$true] %s715
          %718 = dma.vmem_to_hbm [thread:$0]  %s714, 16, %s716, [#allocation8]
        $region84: #{tpu_custom_call.1} parent=47 // pred_fallthru
          _
        // Predicated region
        $region85: #{tpu_custom_call.1} parent=47 // pred_check
          %p719 = pneg %p246
        $region86: #{tpu_custom_call.1} parent=47 // pred_check_branch
          %721 = sbr.rel (%p719) target = $region88
        $region87: #{tpu_custom_call.1} parent=47 // pred_region
          %723 = dma.done [#allocation8], 16
        $region88: #{tpu_custom_call.1} parent=47 // pred_fallthru
          _
      $region48: #{tpu_custom_call.1} parent=5 // pred_fallthru
        _
      %p724 = scmp.le.s32.totalorder 2, %s21
      // Predicated region
      $region89: #{tpu_custom_call.1} parent=5 // pred_check
        %p725 = pneg %p724
      $region90: #{tpu_custom_call.1} parent=5 // pred_check_branch
        %727 = sbr.rel (%p725) target = $region92
      $region91: #{tpu_custom_call.1} parent=5 // pred_region
        %s728 = ssub.s32 %s21, 2
      $region92: #{tpu_custom_call.1} parent=5 // pred_fallthru
        _
    $region6: #{tpu_custom_call.1} parent=1 // loop_footer
      %s25 = sadd.s32 1, %s21
    $region7: #{tpu_custom_call.1} parent=1 // loop_footer_branch
      %20 = sbr.rel target = $region3
    $region8: #{tpu_custom_call.1} parent=1 // loop_exit
      _
    %729 = vsyncpa [#allocation7], 1
    %s730 = scalar_lea.sflag [#allocation7], 1
    %731 = vsyncpa %s730, 1
    %732 = vsyncpa [#allocation10], 1
    %s733 = scalar_lea.sflag [#allocation10], 1
    %734 = vsyncpa %s733, 1
    %735 = vsyncpa [#allocation13], 1
    %s736 = scalar_lea.sflag [#allocation13], 1
    %737 = vsyncpa %s736, 1
    %738 = vsyncpa [#allocation8], 1
    %s739 = scalar_lea.sflag [#allocation8], 1
    %740 = vsyncpa %s739, 1

</llo_original>
